<compile_context>
chip_gen: v5e
topology: v5e:2x2
jax: 0.10.0
libtpu: 0.0.40
codegen_flags: <defaults>
</compile_context>

<pallas_src>
import functools

import jax
import jax.numpy as jnp
from jax.experimental import pallas as pl
from jax.experimental.pallas import tpu as pltpu

LANE = 128                       # TPU lane width (minor dim of a vreg tile)
BIN_ROW_TILE = 1024              # binary path: rows of 128 lanes per block
MC_ROW_CAP = 512                 # multiclass path: max rows per block
MC_BLOCK_BYTE_BUDGET = 2 << 20   # multiclass path: per-input-buffer VMEM budget


def _round_up(a, b):
    return (a + b - 1) // b * b


def _modulator(one_minus_pt, gamma):
    """(1 - p_t) ** gamma with an integer-gamma multiply chain (no pow/EUP) and
    clamping so an ulp overshoot of p_t past 1 cannot produce NaN."""
    s = jnp.maximum(one_minus_pt, 0.0)
    g = float(gamma)
    if g == 0.0:
        return jnp.ones_like(s)
    if g.is_integer() and g <= 16:
        out = s
        for _ in range(int(g) - 1):
            out = out * s
        return out
    return jnp.power(s, jnp.float32(g))


# ----------------------------- binary path ---------------------------------

def _binary_focal_elem(x, t, gamma, with_logits):
    """Per-element binary focal loss (computed in f32)."""
    x = x.astype(jnp.float32)
    t = t.astype(jnp.float32)
    if with_logits:
        # stable BCE-with-logits; e = exp(-|x|) is shared with the sigmoid
        e = jnp.exp(-jnp.abs(x))
        ce = jnp.maximum(x, 0.0) - x * t + jnp.log1p(e)
        r = 1.0 / (1.0 + e)
        prob = jnp.where(x >= 0.0, r, e * r)          # == sigmoid(x), one exp total
    else:
        # torch.binary_cross_entropy clamps log terms at -100
        log_p = jnp.maximum(jnp.log(x), -100.0)
        log_1mp = jnp.maximum(jnp.log(1.0 - x), -100.0)
        ce = -(t * log_p + (1.0 - t) * log_1mp)
        prob = x
    p_t = prob * t + (1.0 - prob) * (1.0 - t)
    return _modulator(1.0 - p_t, gamma) * ce


def _binary_map_kernel(x_ref, t_ref, o_ref, *, gamma, with_logits):
    o_ref[...] = _binary_focal_elem(x_ref[...], t_ref[...], gamma, with_logits)


def _binary_sum_kernel(x_ref, t_ref, o_ref, *, gamma, with_logits, n, tile_rows):
    loss = _binary_focal_elem(x_ref[...], t_ref[...], gamma, with_logits)
    # mask ragged tail (lane padding + partial last block) in-kernel
    base = pl.program_id(0) * (tile_rows * LANE)
    ridx = jax.lax.broadcasted_iota(jnp.int32, loss.shape, 0)
    lidx = jax.lax.broadcasted_iota(jnp.int32, loss.shape, 1)
    loss = jnp.where(base + ridx * LANE + lidx < n, loss, 0.0)
    # per-lane partial sums (pure VPU adds), stored as a lane-dense (8,128) tile
    colsum = jnp.sum(loss, axis=0, keepdims=True)              # (1, LANE)
    row8 = jax.lax.broadcasted_iota(jnp.int32, (8, LANE), 0)
    o_ref[...] = jnp.where(row8 == 0, colsum, 0.0)


def _binary_focal_loss(inputs, targets, gamma, reduction, with_logits):
    orig_shape = inputs.shape
    x = inputs.reshape(-1)
    t = targets.reshape(-1)
    n = x.shape[0]

    rem = (-n) % LANE
    if rem:  # pad only the final ragged lane-row (<=127 elements)
        x = jnp.pad(x, (0, rem))
        t = jnp.pad(t, (0, rem))
    rows = (n + rem) // LANE
    x = x.reshape(rows, LANE)
    t = t.reshape(rows, LANE)

    tile_rows = rows if rows <= BIN_ROW_TILE else BIN_ROW_TILE
    num_blocks = pl.cdiv(rows, tile_rows)
    in_specs = [pl.BlockSpec((tile_rows, LANE), lambda i: (i, 0)),
                pl.BlockSpec((tile_rows, LANE), lambda i: (i, 0))]
    cparams = pltpu.CompilerParams(dimension_semantics=("parallel",))

    if reduction == 'none':
        out = pl.pallas_call(
            functools.partial(_binary_map_kernel, gamma=gamma,
                              with_logits=with_logits),
            out_shape=jax.ShapeDtypeStruct((rows, LANE), jnp.float32),
            grid=(num_blocks,),
            in_specs=in_specs,
            out_specs=pl.BlockSpec((tile_rows, LANE), lambda i: (i, 0)),
            compiler_params=cparams,
        )(x, t)
        return out.reshape(-1)[:n].reshape(orig_shape)

    partials = pl.pallas_call(
        functools.partial(_binary_sum_kernel, gamma=gamma,
                          with_logits=with_logits, n=n, tile_rows=tile_rows),
        out_shape=jax.ShapeDtypeStruct((num_blocks * 8, LANE), jnp.float32),
        grid=(num_blocks,),
        in_specs=in_specs,
        out_specs=pl.BlockSpec((8, LANE), lambda i: (i, 0)),
        compiler_params=cparams,
    )(x, t)
    total = jnp.sum(partials)
    if reduction == 'mean':
        return total / jnp.float32(n)
    return total  # 'sum'


# --------------------------- multiclass path --------------------------------

def _multiclass_focal_rows(x, t, valid, gamma, with_logits):
    """x: (tile_n, C) f32, t: (tile_n, 1) int32 (>=0), valid: (tile_n, 1) bool."""
    onehot = jax.lax.broadcasted_iota(jnp.int32, x.shape, 1) == t
    x_t = jnp.sum(jnp.where(onehot, x, 0.0), axis=-1, keepdims=True)
    if with_logits:
        m = jnp.max(x, axis=-1, keepdims=True)
        lse = m + jnp.log(jnp.sum(jnp.exp(x - m), axis=-1, keepdims=True))
        ce = lse - x_t                 # cross-entropy at the target class
        p_t = jnp.exp(x_t - lse)       # softmax prob of the target class
    else:
        ce = -x_t                      # F.nll_loss: inputs are log-probs
        p_t = x_t                      # module gathers raw inputs as "probs"
    loss = _modulator(1.0 - p_t, gamma) * ce
    return jnp.where(valid, loss, 0.0)  # ignore_index / padded rows -> 0


def _mc_map_kernel(x_ref, t_ref, o_ref, *, gamma, with_logits, n, tile_n):
    t = t_ref[...]
    ridx = (jax.lax.broadcasted_iota(jnp.int32, t.shape, 0)
            + pl.program_id(0) * tile_n)
    valid = (t >= 0) & (ridx < n)
    o_ref[...] = _multiclass_focal_rows(x_ref[...].astype(jnp.float32),
                                        jnp.maximum(t, 0), valid,
                                        gamma, with_logits)


def _mc_sum_kernel(x_ref, t_ref, o_ref, *, gamma, with_logits, n, tile_n):
    t = t_ref[...]
    ridx = (jax.lax.broadcasted_iota(jnp.int32, t.shape, 0)
            + pl.program_id(0) * tile_n)
    valid = (t >= 0) & (ridx < n)
    loss = _multiclass_focal_rows(x_ref[...].astype(jnp.float32),
                                  jnp.maximum(t, 0), valid, gamma, with_logits)
    partial = jnp.sum(loss)
    r8 = jax.lax.broadcasted_iota(jnp.int32, (8, LANE), 0)
    l8 = jax.lax.broadcasted_iota(jnp.int32, (8, LANE), 1)
    o_ref[...] = jnp.where((r8 == 0) & (l8 == 0), partial, 0.0)


def _multiclass_focal_loss(inputs, targets, gamma, reduction, with_logits):
    # inputs: [B, C, *spatial] -> channels-last -> (N, C); class axis on lanes.
    x = jnp.moveaxis(inputs, 1, -1)
    spatial_shape = targets.shape
    c = x.shape[-1]
    x = x.reshape(-1, c)
    t = targets.reshape(-1, 1).astype(jnp.int32)
    n = x.shape[0]

    # Tile height chosen so double-buffered logits blocks stay well inside the
    # scoped-VMEM defaults of every generation (v5e 16 MiB ... v7x 32/64 MiB).
    c_lanes = _round_up(c, LANE)                     # physical lane footprint
    budget_rows = max(8, (MC_BLOCK_BYTE_BUDGET // (4 * c_lanes)) // 8 * 8)
    cap = min(MC_ROW_CAP, budget_rows)
    tile_n = n if n <= cap else cap
    num_blocks = pl.cdiv(n, tile_n)

    x_spec = pl.BlockSpec((tile_n, c), lambda i: (i, 0))    # no C padding
    t_spec = pl.BlockSpec((tile_n, 1), lambda i: (i, 0))
    cparams = pltpu.CompilerParams(dimension_semantics=("parallel",))

    if reduction == 'none':
        # NOTE: per-row loss is produced in sublane-major (tile_n, 1) layout;
        # converting to a lane-dense output would require an in-kernel relayout,
        # so the column store is kept (output traffic is small vs. the logits).
        out = pl.pallas_call(
            functools.partial(_mc_map_kernel, gamma=gamma,
                              with_logits=with_logits, n=n, tile_n=tile_n),
            out_shape=jax.ShapeDtypeStruct((n, 1), jnp.float32),
            grid=(num_blocks,),
            in_specs=[x_spec, t_spec],
            out_specs=pl.BlockSpec((tile_n, 1), lambda i: (i, 0)),
            compiler_params=cparams,
        )(x, t)
        return out[:, 0].reshape(spatial_shape)

    partials = pl.pallas_call(
        functools.partial(_mc_sum_kernel, gamma=gamma,
                          with_logits=with_logits, n=n, tile_n=tile_n),
        out_shape=jax.ShapeDtypeStruct((num_blocks * 8, LANE), jnp.float32),
        grid=(num_blocks,),
        in_specs=[x_spec, t_spec],
        out_specs=pl.BlockSpec((8, LANE), lambda i: (i, 0)),
        compiler_params=cparams,
    )(x, t)
    total = jnp.sum(partials)
    if reduction == 'mean':
        # matches the module: cross_entropy(reduction='none') then .mean() over
        # ALL positions (ignored targets contribute 0 to the numerator).
        return total / jnp.float32(n)
    return total  # 'sum'


# ------------------------------- module -------------------------------------

class FocalLoss:
    """JAX/Pallas port of the PyTorch FocalLoss module (forward pass)."""

    def __init__(self, gamma=2, reduction='mean', with_logits=True, binary=True):
        assert gamma >= 0 and reduction in ['sum', 'mean', 'none']
        self.gamma = gamma
        self.reduction = reduction
        self.with_logits = with_logits
        self.binary = binary

    def __call__(self, inputs, targets):
        if self.binary:
            return _binary_focal_loss(inputs, targets, self.gamma,
                                      self.reduction, self.with_logits)
        return _multiclass_focal_loss(inputs, targets, self.gamma,
                                      self.reduction, self.with_logits)


# ------------------------------- driver --------------------------------------

if __name__ == "__main__":
    key = jax.random.PRNGKey(0)
    k1, k2, k3, k4 = jax.random.split(key, 4)

    # ---- binary (default config): inputs [B, H, W] logits, targets {0,1}
    xb = jax.random.normal(k1, (2, 16, 16), jnp.float32)
    tb = jax.random.randint(k2, (2, 16, 16), 0, 2).astype(jnp.int32)

    tf = tb.astype(jnp.float32)
    ce = jnp.maximum(xb, 0.0) - xb * tf + jnp.log1p(jnp.exp(-jnp.abs(xb)))
    p = jax.nn.sigmoid(xb)
    pt = p * tf + (1.0 - p) * (1.0 - tf)
    ref_elem = (1.0 - pt) ** 2 * ce

    loss_mean = FocalLoss(gamma=2, reduction='mean',
                          with_logits=True, binary=True)(xb, tb)
    loss_mean = jax.block_until_ready(loss_mean)
    assert jnp.allclose(loss_mean, jnp.mean(ref_elem), rtol=1e-5, atol=1e-6), (
        loss_mean, jnp.mean(ref_elem))

    loss_none = FocalLoss(gamma=2, reduction='none',
                          with_logits=True, binary=True)(xb, tb)
    loss_none = jax.block_until_ready(loss_none)
    assert loss_none.shape == xb.shape
    assert jnp.allclose(loss_none, ref_elem, rtol=1e-5, atol=1e-6)

    # ragged element count (not a multiple of 128) exercises in-kernel masking
    xr = jax.random.normal(k3, (3, 7, 5), jnp.float32)
    tr = jax.random.randint(k4, (3, 7, 5), 0, 2).astype(jnp.int32)
    trf = tr.astype(jnp.float32)
    cer = jnp.maximum(xr, 0.0) - xr * trf + jnp.log1p(jnp.exp(-jnp.abs(xr)))
    pr = jax.nn.sigmoid(xr)
    ptr = pr * trf + (1.0 - pr) * (1.0 - trf)
    ref_sum_r = jnp.sum((1.0 - ptr) ** 2 * cer)
    loss_sum_r = FocalLoss(gamma=2, reduction='sum',
                           with_logits=True, binary=True)(xr, tr)
    loss_sum_r = jax.block_until_ready(loss_sum_r)
    assert jnp.allclose(loss_sum_r, ref_sum_r, rtol=1e-5, atol=1e-5), (
        loss_sum_r, ref_sum_r)

    # ---- multiclass: NCHW inputs [B, C, H, W], targets [B, H, W] in [0, C)
    k5, k6 = jax.random.split(k3)
    xm = jax.random.normal(k5, (2, 4, 16, 16), jnp.float32)
    tm = jax.random.randint(k6, (2, 16, 16), 0, 4).astype(jnp.int32)

    xml = jnp.moveaxis(xm, 1, -1)
    lse = jax.scipy.special.logsumexp(xml, axis=-1)
    xt = jnp.take_along_axis(xml, tm[..., None], axis=-1)[..., 0]
    cem = lse - xt
    ptm = jnp.take_along_axis(jax.nn.softmax(xml, axis=-1),
                              tm[..., None], axis=-1)[..., 0]
    ref_mc = (1.0 - ptm) ** 2 * cem

    loss_mc = FocalLoss(gamma=2, reduction='mean',
                        with_logits=True, binary=False)(xm, tm)
    loss_mc = jax.block_until_ready(loss_mc)
    assert jnp.allclose(loss_mc, jnp.mean(ref_mc), rtol=1e-5, atol=1e-6), (
        loss_mc, jnp.mean(ref_mc))

    loss_mc_none = FocalLoss(gamma=2, reduction='none',
                             with_logits=True, binary=False)(xm, tm)
    loss_mc_none = jax.block_until_ready(loss_mc_none)
    assert loss_mc_none.shape == tm.shape
    assert jnp.allclose(loss_mc_none, ref_mc, rtol=1e-5, atol=1e-5)

    print("KERNEL_OK")
</pallas_src>

<mosaic_0001>
module attributes {stable_mosaic.version = 11 : i64} {
  func.func @_binary_sum_kernel(%arg0: i32, %arg1: memref<4x128xf32, #tpu.memory_space<vmem>>, %arg2: memref<4x128xi32, #tpu.memory_space<vmem>>, %arg3: memref<8x128xf32, #tpu.memory_space<vmem>>) attributes {dimension_semantics = [#tpu.dimension_semantics<parallel>], iteration_bounds = array<i64: 1>, scalar_prefetch = 0 : i64, scratch_operands = 0 : i64, tpu.core_type = #tpu.core_type<tc>, window_params = [{transform_indices = @transform_0, window_bounds = array<i64: 4, 128>}, {transform_indices = @transform_1, window_bounds = array<i64: 4, 128>}, {transform_indices = @transform_2, window_bounds = array<i64: 8, 128>}]} {
    %c0 = arith.constant 0 : index
    %c0_0 = arith.constant 0 : index
    %0 = vector.load %arg1[%c0, %c0_0] : memref<4x128xf32, #tpu.memory_space<vmem>>, vector<4x128xf32>
    %c0_1 = arith.constant 0 : index
    %c0_2 = arith.constant 0 : index
    %1 = vector.load %arg2[%c0_1, %c0_2] : memref<4x128xi32, #tpu.memory_space<vmem>>, vector<4x128xi32>
    %2 = arith.sitofp %1 : vector<4x128xi32> to vector<4x128xf32>
    %3 = math.absf %0 : vector<4x128xf32>
    %cst = arith.constant 0.000000e+00 : f32
    %4 = vector.broadcast %cst : f32 to vector<4x128xf32>
    %5 = arith.subf %4, %3 : vector<4x128xf32>
    %6 = math.exp %5 : vector<4x128xf32>
    %cst_3 = arith.constant 0.000000e+00 : f32
    %7 = vector.broadcast %cst_3 : f32 to vector<4x128xf32>
    %8 = arith.maximumf %0, %7 : vector<4x128xf32>
    %9 = arith.mulf %0, %2 : vector<4x128xf32>
    %10 = arith.subf %8, %9 : vector<4x128xf32>
    %11 = math.log1p %6 : vector<4x128xf32>
    %12 = arith.addf %10, %11 : vector<4x128xf32>
    %cst_4 = arith.constant 1.000000e+00 : f32
    %13 = vector.broadcast %cst_4 : f32 to vector<4x128xf32>
    %14 = arith.addf %13, %6 : vector<4x128xf32>
    %cst_5 = arith.constant 1.000000e+00 : f32
    %15 = vector.broadcast %cst_5 : f32 to vector<4x128xf32>
    %16 = arith.divf %15, %14 : vector<4x128xf32>
    %cst_6 = arith.constant 0.000000e+00 : f32
    %17 = vector.broadcast %cst_6 : f32 to vector<4x128xf32>
    %18 = arith.cmpf oge, %0, %17 : vector<4x128xf32>
    %19 = arith.mulf %6, %16 : vector<4x128xf32>
    %20 = arith.select %18, %16, %19 : vector<4x128xi1>, vector<4x128xf32>
    %21 = arith.mulf %20, %2 : vector<4x128xf32>
    %cst_7 = arith.constant 1.000000e+00 : f32
    %22 = vector.broadcast %cst_7 : f32 to vector<4x128xf32>
    %23 = arith.subf %22, %20 : vector<4x128xf32>
    %cst_8 = arith.constant 1.000000e+00 : f32
    %24 = vector.broadcast %cst_8 : f32 to vector<4x128xf32>
    %25 = arith.subf %24, %2 : vector<4x128xf32>
    %26 = arith.mulf %23, %25 : vector<4x128xf32>
    %27 = arith.addf %21, %26 : vector<4x128xf32>
    %cst_9 = arith.constant 1.000000e+00 : f32
    %28 = vector.broadcast %cst_9 : f32 to vector<4x128xf32>
    %29 = arith.subf %28, %27 : vector<4x128xf32>
    %cst_10 = arith.constant 0.000000e+00 : f32
    %30 = vector.broadcast %cst_10 : f32 to vector<4x128xf32>
    %31 = arith.maximumf %29, %30 : vector<4x128xf32>
    %32 = arith.mulf %31, %31 : vector<4x128xf32>
    %33 = arith.mulf %32, %12 : vector<4x128xf32>
    %c512_i32 = arith.constant 512 : i32
    %34 = arith.muli %arg0, %c512_i32 : i32
    %35 = tpu.iota {dimensions = array<i32: 0>} : vector<4x128xi32>
    %36 = tpu.iota {dimensions = array<i32: 1>} : vector<4x128xi32>
    %c128_i32 = arith.constant 128 : i32
    %37 = vector.broadcast %c128_i32 : i32 to vector<4x128xi32>
    %38 = arith.muli %35, %37 : vector<4x128xi32>
    %39 = vector.broadcast %34 : i32 to vector<4x128xi32>
    %40 = arith.addi %39, %38 : vector<4x128xi32>
    %41 = arith.addi %40, %36 : vector<4x128xi32>
    %c512_i32_11 = arith.constant 512 : i32
    %42 = vector.broadcast %c512_i32_11 : i32 to vector<4x128xi32>
    %43 = arith.cmpi slt, %41, %42 : vector<4x128xi32>
    %cst_12 = arith.constant 0.000000e+00 : f32
    %44 = vector.broadcast %cst_12 : f32 to vector<4x128xf32>
    %45 = arith.select %43, %33, %44 : vector<4x128xi1>, vector<4x128xf32>
    %cst_13 = arith.constant dense<0.000000e+00> : vector<128xf32>
    %46 = vector.multi_reduction <add>, %45, %cst_13 [0] : vector<4x128xf32> to vector<128xf32>
    %47 = vector.shape_cast %46 : vector<128xf32> to vector<1x128xf32>
    %48 = tpu.iota {dimensions = array<i32: 0>} : vector<8x128xi32>
    %c0_i32 = arith.constant 0 : i32
    %49 = vector.broadcast %c0_i32 : i32 to vector<8x128xi32>
    %50 = arith.cmpi eq, %48, %49 : vector<8x128xi32>
    %cst_14 = arith.constant 0.000000e+00 : f32
    %51 = vector.shape_cast %47 : vector<1x128xf32> to vector<1x128xf32>
    %52 = vector.broadcast %51 : vector<1x128xf32> to vector<8x128xf32>
    %53 = vector.broadcast %cst_14 : f32 to vector<8x128xf32>
    %54 = arith.select %50, %52, %53 : vector<8x128xi1>, vector<8x128xf32>
    %c0_15 = arith.constant 0 : index
    %c0_16 = arith.constant 0 : index
    %55 = vector.load %arg3[%c0_15, %c0_16] : memref<8x128xf32, #tpu.memory_space<vmem>>, vector<8x128xf32>
    tpu.vector_store %arg3[%c0_15, %c0_16], %54 {strides = array<i32>} : memref<8x128xf32, #tpu.memory_space<vmem>>, vector<8x128xf32>,
    return
  }
  func.func @transform_0(%arg0: i32) -> (i32, i32) {
    %c0_i32 = arith.constant 0 : i32
    %c0_i32_0 = arith.constant 0 : i32
    return %arg0, %c0_i32 : i32, i32
  }
  func.func @transform_1(%arg0: i32) -> (i32, i32) {
    %c0_i32 = arith.constant 0 : i32
    %c0_i32_0 = arith.constant 0 : i32
    return %arg0, %c0_i32 : i32, i32
  }
  func.func @transform_2(%arg0: i32) -> (i32, i32) {
    %c0_i32 = arith.constant 0 : i32
    %c0_i32_0 = arith.constant 0 : i32
    return %arg0, %c0_i32 : i32, i32
  }
}

</mosaic_0001>

<llo_original>
// kernel: tpu_custom_call.1
$region0: #{tpu_custom_call.1}
  #allocation0 [shape = 'u32[]', space=smem, size = 0x4, offset = 0x4, fixed_abs, tag = 'smem constant byte address 0x4 - core index']
  #allocation1 [shape = 'u32[72,128]{1,0:T(1,128)}', space=vmem, size = 0x9000, scoped, tag = 'internal scratch']
  %s0 = inlined_call_operand.hbm [shape: f32[4,128], index: 0, kind: input, shape index: {}]
  %s1 = inlined_call_operand.hbm [shape: s32[4,128], index: 1, kind: input, shape index: {}]
  %s2 = inlined_call_operand.hbm [shape: f32[8,128], index: 2, kind: output, shape index: {}]
  %s3 = sld [smem:[#allocation0]]
  $region26: #{tpu_custom_call.1} parent=0
    _
  %s5 = ssub.s32 1, %s3
  %s6 = scalar_select 0, %s5, %s3
  $region1: #{tpu_custom_call.1} parent=0
    #allocation2 [shape = 'u8[2048]{0}', space=vmem, size = 0x800, scoped, tag = 'input window, operand 0, single buffered']
    #allocation3 [shape = 's32[1]{0}', space=sflag, size = 0x4, scoped, tag = 'scoped memory for tpu_custom_call.1']
    #allocation4 [shape = 's32[1]{0}', space=sflag, size = 0x4, scoped, tag = 'scoped memory for tpu_custom_call.1']
    #allocation5 [shape = 'u8[2048]{0}', space=vmem, size = 0x800, scoped, tag = 'input window, operand 1, single buffered']
    #allocation6 [shape = 's32[1]{0}', space=sflag, size = 0x4, scoped, tag = 'scoped memory for tpu_custom_call.1']
    #allocation7 [shape = 'u8[4096]{0}', space=vmem, size = 0x1000, scoped, tag = 'output window, operand 0, single buffered']
    %7 = vsyncpa [#allocation3], 0
    %8 = vsyncpa [#allocation6], 0
    %9 = vsyncpa [#allocation4], 0
    // Predicated region
    $region2: #{tpu_custom_call.1} parent=1 // pred_check
      _
    $region3: #{tpu_custom_call.1} parent=1 // pred_check_branch
      %11 = sbr.rel (0) target = $region5
    $region4: #{tpu_custom_call.1} parent=1 // pred_region
      %13 = vsyncadd [#allocation3], 0
      %s15 = sshll.u32 %s0, 4
      %s16 = int_to_ptr.hbm [resolvable:$true] %s15
      %s17 = sshll.u32 [#allocation2], 4
      %s18 = int_to_ptr.vmem [resolvable:$true] %s17
      %20 = dma.hbm_to_vmem [thread:$0]  %s16, 64, %s18, [#allocation3]
    $region5: #{tpu_custom_call.1} parent=1 // pred_fallthru
      _
    // Predicated region
    $region6: #{tpu_custom_call.1} parent=1 // pred_check
      _
    $region7: #{tpu_custom_call.1} parent=1 // pred_check_branch
      %22 = sbr.rel (0) target = $region9
    $region8: #{tpu_custom_call.1} parent=1 // pred_region
      %24 = vsyncadd [#allocation6], 0
      %s26 = sshll.u32 %s1, 4
      %s27 = int_to_ptr.hbm [resolvable:$true] %s26
      %s28 = sshll.u32 [#allocation5], 4
      %s29 = int_to_ptr.vmem [resolvable:$true] %s28
      %31 = dma.hbm_to_vmem [thread:$0]  %s27, 64, %s29, [#allocation6]
    $region9: #{tpu_custom_call.1} parent=1 // pred_fallthru
      _
    // Predicated region
    $region10: #{tpu_custom_call.1} parent=1 // pred_check
      _
    $region11: #{tpu_custom_call.1} parent=1 // pred_check_branch
      %33 = sbr.rel (0) target = $region13
    $region12: #{tpu_custom_call.1} parent=1 // pred_region
      %35 = dma.done [#allocation3], 64
    $region13: #{tpu_custom_call.1} parent=1 // pred_fallthru
      _
    // Predicated region
    $region14: #{tpu_custom_call.1} parent=1 // pred_check
      _
    $region15: #{tpu_custom_call.1} parent=1 // pred_check_branch
      %37 = sbr.rel (0) target = $region17
    $region16: #{tpu_custom_call.1} parent=1 // pred_region
      %39 = dma.done [#allocation6], 64
    $region17: #{tpu_custom_call.1} parent=1 // pred_fallthru
      _
    %v40 = vld [vmem:[#allocation2] sm:$0xf]
    %v41 = vld [vmem:[#allocation5] sm:$0xf]
    %v42 = vcvt.s32.f32 %v41
    %v43 = vand.u32 2147483647, %v40
    %v44 = vsub.f32 0.0, %v43
    %v45 = vmul.f32 %v44, 1.442695
    %v46 = vpow.pop %v45
    %v47 = vmax.f32 %v40, 0.0
    %v48 = vmul.f32 %v40, %v42
    %v49 = vsub.f32 %v47, %v48
    %v50 = vadd.f32 %v46, 1.0
    %v51 = vlog2.pop %v50
    %v52 = vmul.f32 %v51, 0.6931472
    %v53 = vmul.f32 -0.5, %v46
    %v54 = vadd.f32 %v53, 1.0
    %v55 = vmul.f32 %v54, %v46
    %v56 = vand.u32 2147483647, %v46
    %vm57 = vcmp.lt.f32.partialorder %v56, 0.0004427343
    %v58 = vsel %vm57, %v55, %v52
    %v59 = vadd.f32 %v49, %v58
    %v60 = vadd.f32 %v46, 1.0
    %v61 = vrcp.pop %v60
    %v62 = vmul.f32 %v60, %v61
    %v63 = vsub.f32 1.0, %v62
    %v64 = vmul.f32 %v61, %v63
    %v65 = vadd.f32 %v61, %v64
    %vm66 = vweird.f32 %v60
    %vm67 = vweird.f32 %v61
    %vm68 = vmor %vm66, %vm67
    %v69 = vsel %vm68, %v61, %v65
    %v70 = vand.u32 2147483647, %v60
    %vm71 = vcmp.eq.f32.partialorder %v70, 8.507059e+37
    %v72 = vand.u32 %v60, 2147483648
    %v73 = vor.u32 1.1754944e-38, %v72
    %v74 = vsel %vm71, %v73, %v69
    %v75 = vmul.f32 1.0, %v74
    %vm76 = vcmp.ge.f32.partialorder %v40, 0.0
    %v77 = vmul.f32 %v46, %v75
    %v78 = vsel %vm76, %v75, %v77
    %v79 = vmul.f32 %v78, %v42
    %v80 = vsub.f32 1.0, %v78
    %v81 = vsub.f32 1.0, %v42
    %v82 = vmul.f32 %v80, %v81
    %v83 = vadd.f32 %v79, %v82
    %v84 = vsub.f32 1.0, %v83
    %v85 = vmax.f32 %v84, 0.0
    %v86 = vmul.f32 %v85, %v85
    %v87 = vmul.f32 %v86, %v59
    %s88 = smul.u32 0, 512
    %v89 = vlaneseq
    %v90 = vshrl.u32 %v89, 7
    %v91 = vlaneseq
    %v92 = vand.u32 %v91, 127
    %v93 = vmul.u32 %v90, 128
    %v94 = vstv %s88
    %v95 = vadd.s32 %v94, %v93
    %v96 = vadd.s32 %v95, %v92
    %vm97 = vcmp.lt.s32.totalorder %v96, 512
    %v98 = vsel %vm97, %v87, 0.0
    %vm99 = vcmask 1043456
    %v100 = vsel %vm99, %v98, 0.0
    %v101 = vrot.slane %v100, 4
    %v102 = vadd.f32 %v100, %v101
    %v103 = vrot.slane %v102, 2
    %v104 = vadd.f32 %v102, %v103
    %v105 = vrot.slane %v104, 1
    %v106 = vadd.f32 %v104, %v105
    %vm107 = vcmp.eq.s32.totalorder %v90, 0
    %v108 = vsel %vm107, %v106, 0.0
    %109 = vst [vmem:[#allocation7] sm:$0xff] %v108
    // Predicated region
    $region18: #{tpu_custom_call.1} parent=1 // pred_check
      _
    $region19: #{tpu_custom_call.1} parent=1 // pred_check_branch
      %111 = sbr.rel (0) target = $region21
    $region20: #{tpu_custom_call.1} parent=1 // pred_region
      %113 = vsyncadd [#allocation4], 0
      %s115 = sshll.u32 [#allocation7], 4
      %s116 = int_to_ptr.vmem [resolvable:$true] %s115
      %s117 = sshll.u32 %s2, 4
      %s118 = int_to_ptr.hbm [resolvable:$true] %s117
      %120 = dma.vmem_to_hbm [thread:$0]  %s116, 128, %s118, [#allocation4]
    $region21: #{tpu_custom_call.1} parent=1 // pred_fallthru
      _
    // Predicated region
    $region22: #{tpu_custom_call.1} parent=1 // pred_check
      _
    $region23: #{tpu_custom_call.1} parent=1 // pred_check_branch
      %122 = sbr.rel (0) target = $region25
    $region24: #{tpu_custom_call.1} parent=1 // pred_region
      %124 = dma.done [#allocation4], 128
    $region25: #{tpu_custom_call.1} parent=1 // pred_fallthru
      _
    %125 = vsyncpa [#allocation3], 1
    %126 = vsyncpa [#allocation6], 1
    %127 = vsyncpa [#allocation4], 1

</llo_original>
